<compile_context>
chip_gen: v7x
topology: tpu7x:2x2x1
jax: 0.10.0
libtpu: 0.0.40
codegen_flags: <defaults>
</compile_context>

<pallas_src>
from functools import partial

import jax
import jax.numpy as jnp
from jax.experimental import pallas as pl
from jax.experimental.pallas import tpu as pltpu


def _fused_kernel(x_ref, wb_ref, bb_ref, wc_ref, bc_ref, kup_ref, o_ref):
    """conv3x3(s2,p1)+bias+ReLU -> 1x1 conv+bias -> bilinear upsample, batched.

    Shapes (B = images per grid step, M = Ho*Wo):
      x_ref   : [1, B*9*C, M]   bf16   im2col, batch folded into sublanes
      wb_ref  : [B*Cf, B*9*C]   bf16   block-diagonal conv weights
      bb_ref  : [B*Cf, 1]       f32
      wc_ref  : [B*ncls, B*Cf]  bf16   block-diagonal classifier weights
      bc_ref  : [B*ncls, 1]     f32
      kup_ref : [M, H*W]        f32    align_corners bilinear operator
      o_ref   : [1, B*ncls, H*W] f32
    """
    x = x_ref[0]                                                       # [B*9C, M]

    # backbone: 3x3 stride-2 conv == ONE matmul (B*36-deep contraction) + ReLU
    feat = jnp.dot(wb_ref[...], x, preferred_element_type=jnp.float32)  # [B*Cf, M]
    feat = jnp.maximum(feat + bb_ref[...], 0.0)

    # classifier: 1x1 conv == channel matmul (block-diagonal over batch)
    logits = jnp.dot(wc_ref[...], feat.astype(jnp.bfloat16),
                     preferred_element_type=jnp.float32) + bc_ref[...]  # [B*ncls, M]

    # bilinear upsample (align_corners=True) as one lane/sublane-dense matmul
    o_ref[0] = jnp.dot(logits, kup_ref[...],
                       preferred_element_type=jnp.float32)              # [B*ncls, H*W]


def _interp_matrix(out_size, in_size):
    """align_corners=True bilinear interpolation matrix [out_size, in_size] (f32)."""
    if out_size == 1:
        src = jnp.zeros((1,), jnp.float32)
    else:
        src = jnp.arange(out_size, dtype=jnp.float32) * (in_size - 1) / (out_size - 1)
    i0 = jnp.clip(jnp.floor(src).astype(jnp.int32), 0, in_size - 1)
    i1 = jnp.clip(i0 + 1, 0, in_size - 1)
    frac = src - i0.astype(jnp.float32)
    return ((1.0 - frac)[:, None] * jax.nn.one_hot(i0, in_size, dtype=jnp.float32)
            + frac[:, None] * jax.nn.one_hot(i1, in_size, dtype=jnp.float32))


@partial(jax.jit, static_argnames=("b_blk",))
def simple_segmentation_forward(x_nchw, params, *, b_blk=8):
    """x: [N, C_in, H, W] f32 (NCHW, PyTorch layout) -> [N, n_cls, H, W] f32."""
    n, c_in, h, w = x_nchw.shape
    wb, bb = params["w_backbone"], params["b_backbone"]        # [Cf,C,3,3], [Cf]
    wc, bc = params["w_classifier"], params["b_classifier"]    # [ncls,Cf,1,1], [ncls]
    c_feat, n_cls = wb.shape[0], wc.shape[0]
    ho = (h + 2 - 3) // 2 + 1                                  # conv k=3, s=2, p=1
    wo = (w + 2 - 3) // 2 + 1
    m = ho * wo

    # ---- pad batch to a multiple of the batch block --------------------------
    n_pad = -(-n // b_blk) * b_blk
    if n_pad != n:
        x_nchw = jnp.pad(x_nchw, ((0, n_pad - n), (0, 0), (0, 0), (0, 0)))
    n_blocks = n_pad // b_blk

    # ---- im2col for the stride-2 / pad-1 / k=3 conv (tap-major, channel-minor)
    # bf16 slab is ~1.1x the f32 input bytes (4x fewer spatial positions, 9 taps,
    # half-width dtype), so HBM prep traffic stays ~1x.
    pad_b, pad_r = 2 * ho - h, 2 * wo - w                      # 0 (even) or 1 (odd)
    xp = jnp.pad(x_nchw, ((0, 0), (0, 0), (1, pad_b), (1, pad_r)))
    taps = []
    for kh in range(3):
        for kw in range(3):
            s = xp[:, :, kh:kh + 2 * ho - 1:2, kw:kw + 2 * wo - 1:2]   # [Np,C,Ho,Wo]
            taps.append(s.reshape(n_pad, c_in, m))
    x_col = jnp.concatenate(taps, axis=1)                              # [Np, 9C, M]
    x_col = x_col.reshape(n_blocks, b_blk * 9 * c_in, m).astype(jnp.bfloat16)

    # ---- block-diagonal (batched) weights: kron(I_B, W) -----------------------
    wb2 = jnp.transpose(wb, (0, 2, 3, 1)).reshape(c_feat, 9 * c_in)    # [Cf, 9C]
    wc2 = wc.reshape(n_cls, c_feat)                                    # [ncls, Cf]
    eye = jnp.eye(b_blk, dtype=jnp.float32)
    wb_bd = jnp.kron(eye, wb2).astype(jnp.bfloat16)                    # [B*Cf, B*9C]
    wc_bd = jnp.kron(eye, wc2).astype(jnp.bfloat16)                    # [B*ncls, B*Cf]
    bb_bd = jnp.tile(bb, b_blk).reshape(b_blk * c_feat, 1).astype(jnp.float32)
    bc_bd = jnp.tile(bc, b_blk).reshape(b_blk * n_cls, 1).astype(jnp.float32)

    # Fused bilinear-upsample operator (align_corners=True), f32: [Ho*Wo, H*W]
    kup = jnp.kron(_interp_matrix(h, ho), _interp_matrix(w, wo)).T.astype(jnp.float32)

    out = pl.pallas_call(
        _fused_kernel,
        out_shape=jax.ShapeDtypeStruct((n_blocks, b_blk * n_cls, h * w), jnp.float32),
        grid=(n_blocks,),
        in_specs=[
            pl.BlockSpec((1, b_blk * 9 * c_in, m), lambda i: (i, 0, 0)),     # im2col block
            pl.BlockSpec((b_blk * c_feat, b_blk * 9 * c_in), lambda i: (0, 0)),  # conv W (pinned)
            pl.BlockSpec((b_blk * c_feat, 1), lambda i: (0, 0)),             # conv bias
            pl.BlockSpec((b_blk * n_cls, b_blk * c_feat), lambda i: (0, 0)),  # cls W (pinned)
            pl.BlockSpec((b_blk * n_cls, 1), lambda i: (0, 0)),              # cls bias
            pl.BlockSpec((m, h * w), lambda i: (0, 0)),                      # upsample op
        ],
        out_specs=pl.BlockSpec((1, b_blk * n_cls, h * w), lambda i: (i, 0, 0)),
        compiler_params=pltpu.CompilerParams(
            dimension_semantics=("parallel",)),                               # megacore batch split
    )(x_col, wb_bd, bb_bd, wc_bd, bc_bd, kup)

    return out.reshape(n_pad, n_cls, h, w)[:n]


def make_params(key, c_in=4, c_feat=8, n_cls=3):
    """PyTorch-layout parameters for the concrete backbone/classifier pair."""
    k1, k2, k3, k4 = jax.random.split(key, 4)
    return {
        "w_backbone": 0.1 * jax.random.normal(k1, (c_feat, c_in, 3, 3), jnp.float32),
        "b_backbone": 0.1 * jax.random.normal(k2, (c_feat,), jnp.float32),
        "w_classifier": 0.1 * jax.random.normal(k3, (n_cls, c_feat, 1, 1), jnp.float32),
        "b_classifier": 0.1 * jax.random.normal(k4, (n_cls,), jnp.float32),
    }


def _reference_forward(x_nchw, params):
    """Pure-JAX f32 reference of the same module (no Pallas, no bf16)."""
    n, c_in, h, w = x_nchw.shape
    wb, bb = params["w_backbone"], params["b_backbone"]
    wc, bc = params["w_classifier"], params["b_classifier"]
    feat = jax.lax.conv_general_dilated(
        x_nchw, wb, window_strides=(2, 2), padding=((1, 1), (1, 1)),
        dimension_numbers=("NCHW", "OIHW", "NCHW")) + bb[None, :, None, None]
    feat = jnp.maximum(feat, 0.0)
    logits = jax.lax.conv_general_dilated(
        feat, wc, window_strides=(1, 1), padding="VALID",
        dimension_numbers=("NCHW", "OIHW", "NCHW")) + bc[None, :, None, None]
    ho, wo = logits.shape[2], logits.shape[3]
    wh = _interp_matrix(h, ho)
    ww = _interp_matrix(w, wo)
    return jnp.einsum("yh,nchw,xw->ncyx", wh, logits, ww)


if __name__ == "__main__":
    key = jax.random.PRNGKey(0)
    kx, kp = jax.random.split(key)
    params = make_params(kp, c_in=4, c_feat=8, n_cls=3)

    # Primary: batched case (B_blk=8 images per grid step, 4 grid steps).
    x = jax.random.normal(kx, (32, 4, 16, 16), jnp.float32)            # NCHW, like PyTorch
    out = jax.block_until_ready(simple_segmentation_forward(x, params))
    assert out.shape == (32, 3, 16, 16), out.shape
    ref = jax.block_until_ready(_reference_forward(x, params))
    max_err = float(jnp.max(jnp.abs(out - ref)))
    assert jnp.allclose(out, ref, rtol=2e-2, atol=2e-2), max_err

    # Module-spec small batch (exercises the batch-padding path, grid=1).
    x2 = jax.random.normal(jax.random.PRNGKey(1), (2, 4, 16, 16), jnp.float32)
    out2 = jax.block_until_ready(simple_segmentation_forward(x2, params))
    ref2 = _reference_forward(x2, params)
    assert out2.shape == (2, 3, 16, 16), out2.shape
    assert jnp.allclose(out2, ref2, rtol=2e-2, atol=2e-2)

    # Odd spatial sizes (review correctness concern: extra padded row/col path).
    x3 = jax.random.normal(jax.random.PRNGKey(2), (8, 4, 15, 17), jnp.float32)
    out3 = jax.block_until_ready(simple_segmentation_forward(x3, params))
    ref3 = _reference_forward(x3, params)
    assert out3.shape == (8, 3, 15, 17), out3.shape
    assert jnp.allclose(out3, ref3, rtol=2e-2, atol=2e-2)

    print("KERNEL_OK")
</pallas_src>

<mosaic_0001>
module attributes {stable_mosaic.version = 11 : i64} {
  func.func @_fused_kernel(%arg0: i32, %arg1: memref<1x288x64xbf16, #tpu.memory_space<vmem>>, %arg2: memref<64x288xbf16, #tpu.memory_space<vmem>>, %arg3: memref<64x1xf32, #tpu.memory_space<vmem>>, %arg4: memref<24x64xbf16, #tpu.memory_space<vmem>>, %arg5: memref<24x1xf32, #tpu.memory_space<vmem>>, %arg6: memref<64x256xf32, #tpu.memory_space<vmem>>, %arg7: memref<1x24x256xf32, #tpu.memory_space<vmem>>) attributes {dimension_semantics = [#tpu.dimension_semantics<parallel>], iteration_bounds = array<i64: 4>, scalar_prefetch = 0 : i64, scratch_operands = 0 : i64, tpu.core_type = #tpu.core_type<tc>, window_params = [{transform_indices = @transform_0, window_bounds = array<i64: 1, 288, 64>}, {pipeline_mode = #tpu.pipeline_mode<synchronous>, transform_indices = @transform_1, window_bounds = array<i64: 64, 288>}, {pipeline_mode = #tpu.pipeline_mode<synchronous>, transform_indices = @transform_2, window_bounds = array<i64: 64, 1>}, {pipeline_mode = #tpu.pipeline_mode<synchronous>, transform_indices = @transform_3, window_bounds = array<i64: 24, 64>}, {pipeline_mode = #tpu.pipeline_mode<synchronous>, transform_indices = @transform_4, window_bounds = array<i64: 24, 1>}, {pipeline_mode = #tpu.pipeline_mode<synchronous>, transform_indices = @transform_5, window_bounds = array<i64: 64, 256>}, {transform_indices = @transform_6, window_bounds = array<i64: 1, 24, 256>}]} {
    %c0 = arith.constant 0 : index
    %c0_0 = arith.constant 0 : index
    %c0_1 = arith.constant 0 : index
    %0 = vector.load %arg1[%c0, %c0_0, %c0_1] : memref<1x288x64xbf16, #tpu.memory_space<vmem>>, vector<1x288x64xbf16>
    %1 = vector.shape_cast %0 : vector<1x288x64xbf16> to vector<288x64xbf16>
    %c0_2 = arith.constant 0 : index
    %c0_3 = arith.constant 0 : index
    %2 = vector.load %arg2[%c0_2, %c0_3] : memref<64x288xbf16, #tpu.memory_space<vmem>>, vector<64x288xbf16>
    %cst = arith.constant dense<0.000000e+00> : vector<64x64xf32>
    %3 = tpu.matmul %2, %1, %cst {dimension_numbers = #tpu.dot_dimension_numbers<[1], [0], [0], [1], [0, 0, 1, 1], [], []>} : vector<64x288xbf16>, vector<288x64xbf16>, vector<64x64xf32> -> vector<64x64xf32>
    %c0_4 = arith.constant 0 : index
    %c0_5 = arith.constant 0 : index
    %4 = vector.load %arg3[%c0_4, %c0_5] : memref<64x1xf32, #tpu.memory_space<vmem>>, vector<64x1xf32>
    %5 = vector.broadcast %4 : vector<64x1xf32> to vector<64x64xf32>
    %6 = arith.addf %3, %5 : vector<64x64xf32>
    %cst_6 = arith.constant 0.000000e+00 : f32
    %7 = vector.broadcast %cst_6 : f32 to vector<64x64xf32>
    %8 = arith.maximumf %6, %7 : vector<64x64xf32>
    %c0_7 = arith.constant 0 : index
    %c0_8 = arith.constant 0 : index
    %9 = vector.load %arg4[%c0_7, %c0_8] : memref<24x64xbf16, #tpu.memory_space<vmem>>, vector<24x64xbf16>
    %10 = arith.truncf %8 : vector<64x64xf32> to vector<64x64xbf16>
    %cst_9 = arith.constant dense<0.000000e+00> : vector<24x64xf32>
    %11 = tpu.matmul %9, %10, %cst_9 {dimension_numbers = #tpu.dot_dimension_numbers<[1], [0], [0], [1], [0, 0, 1, 1], [], []>} : vector<24x64xbf16>, vector<64x64xbf16>, vector<24x64xf32> -> vector<24x64xf32>
    %c0_10 = arith.constant 0 : index
    %c0_11 = arith.constant 0 : index
    %12 = vector.load %arg5[%c0_10, %c0_11] : memref<24x1xf32, #tpu.memory_space<vmem>>, vector<24x1xf32>
    %13 = vector.broadcast %12 : vector<24x1xf32> to vector<24x64xf32>
    %14 = arith.addf %11, %13 : vector<24x64xf32>
    %c0_12 = arith.constant 0 : index
    %c0_13 = arith.constant 0 : index
    %15 = vector.load %arg6[%c0_12, %c0_13] : memref<64x256xf32, #tpu.memory_space<vmem>>, vector<64x256xf32>
    %cst_14 = arith.constant dense<0.000000e+00> : vector<24x256xf32>
    %16 = tpu.matmul %14, %15, %cst_14 {dimension_numbers = #tpu.dot_dimension_numbers<[1], [0], [0], [1], [0, 0, 1, 1], [], []>} : vector<24x64xf32>, vector<64x256xf32>, vector<24x256xf32> -> vector<24x256xf32>
    %c0_15 = arith.constant 0 : index
    %c0_16 = arith.constant 0 : index
    %c0_17 = arith.constant 0 : index
    %17 = vector.load %arg7[%c0_15, %c0_16, %c0_17] : memref<1x24x256xf32, #tpu.memory_space<vmem>>, vector<1x24x256xf32>
    %18 = vector.shape_cast %17 : vector<1x24x256xf32> to vector<24x256xf32>
    %19 = vector.shape_cast %16 : vector<24x256xf32> to vector<1x24x256xf32>
    tpu.vector_store %arg7[%c0_15, %c0_16, %c0_17], %19 {strides = array<i32>} : memref<1x24x256xf32, #tpu.memory_space<vmem>>, vector<1x24x256xf32>,
    return
  }
  func.func @transform_0(%arg0: i32) -> (i32, i32, i32) {
    %c0_i32 = arith.constant 0 : i32
    %c0_i32_0 = arith.constant 0 : i32
    %c0_i32_1 = arith.constant 0 : i32
    return %arg0, %c0_i32, %c0_i32_0 : i32, i32, i32
  }
  func.func @transform_1(%arg0: i32) -> (i32, i32) {
    %c0_i32 = arith.constant 0 : i32
    %c0_i32_0 = arith.constant 0 : i32
    %c0_i32_1 = arith.constant 0 : i32
    return %c0_i32, %c0_i32_0 : i32, i32
  }
  func.func @transform_2(%arg0: i32) -> (i32, i32) {
    %c0_i32 = arith.constant 0 : i32
    %c0_i32_0 = arith.constant 0 : i32
    %c0_i32_1 = arith.constant 0 : i32
    return %c0_i32, %c0_i32_0 : i32, i32
  }
  func.func @transform_3(%arg0: i32) -> (i32, i32) {
    %c0_i32 = arith.constant 0 : i32
    %c0_i32_0 = arith.constant 0 : i32
    %c0_i32_1 = arith.constant 0 : i32
    return %c0_i32, %c0_i32_0 : i32, i32
  }
  func.func @transform_4(%arg0: i32) -> (i32, i32) {
    %c0_i32 = arith.constant 0 : i32
    %c0_i32_0 = arith.constant 0 : i32
    %c0_i32_1 = arith.constant 0 : i32
    return %c0_i32, %c0_i32_0 : i32, i32
  }
  func.func @transform_5(%arg0: i32) -> (i32, i32) {
    %c0_i32 = arith.constant 0 : i32
    %c0_i32_0 = arith.constant 0 : i32
    %c0_i32_1 = arith.constant 0 : i32
    return %c0_i32, %c0_i32_0 : i32, i32
  }
  func.func @transform_6(%arg0: i32) -> (i32, i32, i32) {
    %c0_i32 = arith.constant 0 : i32
    %c0_i32_0 = arith.constant 0 : i32
    %c0_i32_1 = arith.constant 0 : i32
    return %arg0, %c0_i32, %c0_i32_0 : i32, i32, i32
  }
}

</mosaic_0001>

<llo_original>
// kernel: tile.13
$region0: #{tile.13}
  #allocation0 [shape = 's32[1]{0}', space=sflag, size = 0x4, scoped, tag = 'scoped memory for tile.13']
  %s0 = inlined_call_operand.vmem [shape: f32[8], index: 0, kind: input, shape index: {}]
  %s1 = inlined_call_operand.vmem [shape: f32[8,8], index: 1, kind: output, shape index: {}]
  // Predicated region
  $region2: #{tile.13} parent=0 // pred_check
    _
  $region3: #{tile.13} parent=0 // pred_check_branch
    %3 = sbr.rel (0) target = $region5
  $region4: #{tile.13} parent=0 // pred_region
    _
  $region5: #{tile.13} parent=0 // pred_fallthru
    _
  %v4 = vld [vmem:[%s0] ss:$0 sm:$0xff]
  %5 = vst [vmem:[%s1] sm:$0xff] %v4

// kernel: tile.18
$region0: #{tile.18}
  #allocation0 [shape = 's32[1]{0}', space=sflag, size = 0x4, scoped, tag = 'scoped memory for tile.18']
  %s0 = inlined_call_operand.vmem [shape: f32[3], index: 0, kind: input, shape index: {}]
  %s1 = inlined_call_operand.vmem [shape: f32[8,3], index: 1, kind: output, shape index: {}]
  // Predicated region
  $region2: #{tile.18} parent=0 // pred_check
    _
  $region3: #{tile.18} parent=0 // pred_check_branch
    %3 = sbr.rel (0) target = $region5
  $region4: #{tile.18} parent=0 // pred_region
    _
  $region5: #{tile.18} parent=0 // pred_fallthru
    _
  %v4 = vld [vmem:[%s0] ss:$0 sm:$0xff]
  %5 = vst [vmem:[%s1] sm:$0xff] %v4

// kernel: tile.1
$region0: #{tile.1}
  %s0 = inlined_call_operand.vmem [shape: f32[8,3], index: 0, kind: input, shape index: {}]
  %s1 = inlined_call_operand.vmem [shape: f32[24,1], index: 1, kind: output, shape index: {}]
  %v2 = vld [vmem:[%s0] sm:$0xff]
  %vm3 = vcmask 7168
  %4 = vst.msk [vmem:[%s1] ss:$3 sm:$0xff] %vm3, %v2
  %v5 = vld [vmem:[%s0] sm:$0xff]
  %6 = vrot.lane.b32.xlu0 %v5, 127
  %v7 = vpop.permute.xlu0 %6
  %vm8 = vcmask 7168
  %s9 = scalar_lea.vmem %s1, 1
  %10 = vst.msk [vmem:[%s9] ss:$3 sm:$0xff] %vm8, %v7
  %v11 = vld [vmem:[%s0] sm:$0xff]
  %12 = vrot.lane.b32.xlu0 %v11, 126
  %v13 = vpop.permute.xlu0 %12
  %vm14 = vcmask 7168
  %s15 = scalar_lea.vmem %s1, 2
  %16 = vst.msk [vmem:[%s15] ss:$3 sm:$0xff] %vm14, %v13

// kernel: mul.4
$region0: #{mul.4}
  %s0 = inlined_call_operand.vmem [shape: f32[8,3,3,4], index: 0, kind: input, shape index: {}]
  %s1 = inlined_call_operand.vmem [shape: f32[8,36], index: 1, kind: output, shape index: {}]
  $region1: #{mul.4} parent=0
    #allocation0 [shape = 'u8[36864]{0}', space=vmem, size = 0x9000, scoped, tag = 'scoped mem for input reshape']
    %s3 = sshllo.u32 0, 4
    %s4 = smul.addr 4, 8
    %s5 = scalar_lea.vmem %s0, %s4
    %v6 = vld [vmem:[%s5] sm:%s3]
    %s7 = scalar_lea.vmem [#allocation0], 64
    %8 = vst [vmem:[%s7] sm:%s3] %v6
    %s9 = smul.addr 4, 7
    %s10 = scalar_lea.vmem %s0, %s9
    %v11 = vld [vmem:[%s10] sm:%s3]
    %s12 = scalar_lea.vmem [#allocation0], 56
    %13 = vst [vmem:[%s12] sm:%s3] %v11
    %s14 = smul.addr 4, 6
    %s15 = scalar_lea.vmem %s0, %s14
    %v16 = vld [vmem:[%s15] sm:%s3]
    %s17 = scalar_lea.vmem [#allocation0], 48
    %18 = vst [vmem:[%s17] sm:%s3] %v16
    %s19 = smul.addr 4, 5
    %s20 = scalar_lea.vmem %s0, %s19
    %v21 = vld [vmem:[%s20] sm:%s3]
    %s22 = scalar_lea.vmem [#allocation0], 40
    %23 = vst [vmem:[%s22] sm:%s3] %v21
    %s24 = smul.addr 4, 4
    %s25 = scalar_lea.vmem %s0, %s24
    %v26 = vld [vmem:[%s25] sm:%s3]
    %s27 = scalar_lea.vmem [#allocation0], 32
    %28 = vst [vmem:[%s27] sm:%s3] %v26
    %s29 = smul.addr 4, 3
    %s30 = scalar_lea.vmem %s0, %s29
    %v31 = vld [vmem:[%s30] sm:%s3]
    %s32 = scalar_lea.vmem [#allocation0], 24
    %33 = vst [vmem:[%s32] sm:%s3] %v31
    %s34 = smul.addr 4, 2
    %s35 = scalar_lea.vmem %s0, %s34
    %v36 = vld [vmem:[%s35] sm:%s3]
    %s37 = scalar_lea.vmem [#allocation0], 16
    %38 = vst [vmem:[%s37] sm:%s3] %v36
    %s39 = scalar_lea.vmem %s0, 4
    %v40 = vld [vmem:[%s39] sm:%s3]
    %s41 = scalar_lea.vmem [#allocation0], 8
    %42 = vst [vmem:[%s41] sm:%s3] %v40
    %v43 = vld [vmem:[%s0] sm:%s3]
    %44 = vst [vmem:[#allocation0] sm:%s3] %v43
    %v45 = vld [vmem:[#allocation0] sm:$0xf]
    %vm46 = vcmask 64512
    %47 = vst.msk [vmem:[%s1] sm:$0xf] %vm46, %v45
    %s48 = scalar_lea.vmem [#allocation0], 8
    %v49 = vld [vmem:[%s48] sm:$0xf]
    %vm50 = vcmask 64512
    %s51 = scalar_lea.vmem %s1, 4
    %52 = vst.msk [vmem:[%s51] sm:$0xf] %vm50, %v49
    %s53 = scalar_lea.vmem [#allocation0], 16
    %v54 = vld [vmem:[%s53] sm:$0xf]
    %vm55 = vcmask 64512
    %s56 = scalar_lea.vmem %s1, 8
    %57 = vst.msk [vmem:[%s56] sm:$0xf] %vm55, %v54
    %s58 = scalar_lea.vmem [#allocation0], 24
    %v59 = vld [vmem:[%s58] sm:$0xf]
    %vm60 = vcmask 64512
    %s61 = scalar_lea.vmem %s1, 12
    %62 = vst.msk [vmem:[%s61] sm:$0xf] %vm60, %v59
    %s63 = scalar_lea.vmem [#allocation0], 32
    %v64 = vld [vmem:[%s63] sm:$0xf]
    %vm65 = vcmask 64512
    %s66 = scalar_lea.vmem %s1, 16
    %67 = vst.msk [vmem:[%s66] sm:$0xf] %vm65, %v64
    %s68 = scalar_lea.vmem [#allocation0], 40
    %v69 = vld [vmem:[%s68] sm:$0xf]
    %vm70 = vcmask 64512
    %s71 = scalar_lea.vmem %s1, 20
    %72 = vst.msk [vmem:[%s71] sm:$0xf] %vm70, %v69
    %s73 = scalar_lea.vmem [#allocation0], 48
    %v74 = vld [vmem:[%s73] sm:$0xf]
    %vm75 = vcmask 64512
    %s76 = scalar_lea.vmem %s1, 24
    %77 = vst.msk [vmem:[%s76] sm:$0xf] %vm75, %v74
    %s78 = scalar_lea.vmem [#allocation0], 56
    %v79 = vld [vmem:[%s78] sm:$0xf]
    %vm80 = vcmask 64512
    %s81 = scalar_lea.vmem %s1, 28
    %82 = vst.msk [vmem:[%s81] sm:$0xf] %vm80, %v79
    %s83 = scalar_lea.vmem [#allocation0], 64
    %v84 = vld [vmem:[%s83] sm:$0xf]
    %vm85 = vcmask 64512
    %s86 = scalar_lea.vmem %s1, 32
    %87 = vst.msk [vmem:[%s86] sm:$0xf] %vm85, %v84

// kernel: tile.0
$region0: #{tile.0}
  %s0 = inlined_call_operand.vmem [shape: f32[8,8], index: 0, kind: input, shape index: {}]
  %s1 = inlined_call_operand.vmem [shape: f32[64,1], index: 1, kind: output, shape index: {}]
  %v2 = vld [vmem:[%s0] sm:$0xff]
  %vm3 = vcmask 7168
  %4 = vst.msk [vmem:[%s1] ss:$8 sm:$0xf] %vm3, %v2
  %5 = vst.msk [vmem:[%s1] ss:$8 sm:$0xf0] %vm3, %v2
  %v6 = vld [vmem:[%s0] sm:$0xff]
  %7 = vrot.lane.b32.xlu0 %v6, 127
  %v8 = vpop.permute.xlu0 %7
  %vm9 = vcmask 7168
  %s10 = scalar_lea.vmem %s1, 1
  %11 = vst.msk [vmem:[%s10] ss:$8 sm:$0xf] %vm9, %v8
  %s12 = scalar_lea.vmem %s1, 1
  %13 = vst.msk [vmem:[%s12] ss:$8 sm:$0xf0] %vm9, %v8
  %v14 = vld [vmem:[%s0] sm:$0xff]
  %15 = vrot.lane.b32.xlu0 %v14, 126
  %v16 = vpop.permute.xlu0 %15
  %vm17 = vcmask 7168
  %s18 = scalar_lea.vmem %s1, 2
  %19 = vst.msk [vmem:[%s18] ss:$8 sm:$0xf] %vm17, %v16
  %s20 = scalar_lea.vmem %s1, 2
  %21 = vst.msk [vmem:[%s20] ss:$8 sm:$0xf0] %vm17, %v16
  %v22 = vld [vmem:[%s0] sm:$0xff]
  %23 = vrot.lane.b32.xlu0 %v22, 125
  %v24 = vpop.permute.xlu0 %23
  %vm25 = vcmask 7168
  %s26 = scalar_lea.vmem %s1, 3
  %27 = vst.msk [vmem:[%s26] ss:$8 sm:$0xf] %vm25, %v24
  %s28 = scalar_lea.vmem %s1, 3
  %29 = vst.msk [vmem:[%s28] ss:$8 sm:$0xf0] %vm25, %v24
  %v30 = vld [vmem:[%s0] sm:$0xff]
  %31 = vrot.lane.b32.xlu0 %v30, 124
  %v32 = vpop.permute.xlu0 %31
  %vm33 = vcmask 7168
  %s34 = scalar_lea.vmem %s1, 4
  %35 = vst.msk [vmem:[%s34] ss:$8 sm:$0xf] %vm33, %v32
  %s36 = scalar_lea.vmem %s1, 4
  %37 = vst.msk [vmem:[%s36] ss:$8 sm:$0xf0] %vm33, %v32
  %v38 = vld [vmem:[%s0] sm:$0xff]
  %39 = vrot.lane.b32.xlu0 %v38, 123
  %v40 = vpop.permute.xlu0 %39
  %vm41 = vcmask 7168
  %s42 = scalar_lea.vmem %s1, 5
  %43 = vst.msk [vmem:[%s42] ss:$8 sm:$0xf] %vm41, %v40
  %s44 = scalar_lea.vmem %s1, 5
  %45 = vst.msk [vmem:[%s44] ss:$8 sm:$0xf0] %vm41, %v40
  %v46 = vld [vmem:[%s0] sm:$0xff]
  %47 = vrot.lane.b32.xlu0 %v46, 122
  %v48 = vpop.permute.xlu0 %47
  %vm49 = vcmask 7168
  %s50 = scalar_lea.vmem %s1, 6
  %51 = vst.msk [vmem:[%s50] ss:$8 sm:$0xf] %vm49, %v48
  %s52 = scalar_lea.vmem %s1, 6
  %53 = vst.msk [vmem:[%s52] ss:$8 sm:$0xf0] %vm49, %v48
  %v54 = vld [vmem:[%s0] sm:$0xff]
  %55 = vrot.lane.b32.xlu0 %v54, 121
  %v56 = vpop.permute.xlu0 %55
  %vm57 = vcmask 7168
  %s58 = scalar_lea.vmem %s1, 7
  %59 = vst.msk [vmem:[%s58] ss:$8 sm:$0xf] %vm57, %v56
  %s60 = scalar_lea.vmem %s1, 7
  %61 = vst.msk [vmem:[%s60] ss:$8 sm:$0xf0] %vm57, %v56

// kernel: simple_segmentation_forward.1
$region0: #{simple_segmentation_forward.1}
  #allocation0 [shape = 'u32[]', space=smem, size = 0x4, offset = 0x4, fixed_abs, tag = 'smem constant byte address 0x4 - core index']
  #allocation1 [shape = 'u32[144,128]{1,0:T(1,128)}', space=vmem, size = 0x12000, scoped, tag = 'internal scratch']
  %s0 = inlined_call_operand.vmem [shape: bf16[4,288,64], index: 0, kind: input, shape index: {}]
  %s1 = inlined_call_operand.vmem [shape: bf16[64,288], index: 1, kind: input, shape index: {}]
  %s2 = inlined_call_operand.vmem [shape: f32[64,1], index: 2, kind: input, shape index: {}]
  %s3 = inlined_call_operand.vmem [shape: bf16[24,64], index: 3, kind: input, shape index: {}]
  %s4 = inlined_call_operand.vmem [shape: f32[24,1], index: 4, kind: input, shape index: {}]
  %s5 = inlined_call_operand.vmem [shape: f32[64,256], index: 5, kind: input, shape index: {}]
  %s6 = inlined_call_operand.vmem [shape: f32[4,24,256], index: 6, kind: output, shape index: {}]
  %s7 = sld [smem:[#allocation0]]
  $region57: #{simple_segmentation_forward.1} parent=0
    _
  %s9 = ssub.s32 1, %s7
  %s10 = scalar_select 0, %s9, %s7
  loop: start=0, step=1, limit=6
  $region2: #{simple_segmentation_forward.1} parent=0 // loop_pre_header
    _
  $region3: #{simple_segmentation_forward.1} parent=0 // loop_header
    %s12 = sphi 0, %s16
    %p13 = scmp.ge.s32.totalorder %s12, 6
    %s22 = sphi 0, %s24
    %s25 = sphi 0, %s22
    %s26 = sphi 0, %s25
    %s42 = sphi 0, %s26
    %s46 = sphi 0, %s46
    %s48 = sphi 0, %s46
    %s49 = sphi 0, %s48
    %s63 = sphi 0, %s49
    %s67 = sphi 0, %s67
    %s69 = sphi 0, %s67
    %s70 = sphi 0, %s69
    %s84 = sphi 0, %s70
    %s88 = sphi 0, %s88
    %s90 = sphi 0, %s88
    %s91 = sphi 0, %s90
    %s105 = sphi 0, %s91
    %s109 = sphi 0, %s109
    %s111 = sphi 0, %s109
    %s112 = sphi 0, %s111
    %s126 = sphi 0, %s112
    %s130 = sphi 0, %s130
    %s132 = sphi 0, %s130
    %s133 = sphi 0, %s132
    %s147 = sphi 0, %s133
    %s153 = sphi 0, %s155
    %s156 = sphi 0, %s153
    %s157 = sphi 0, %s156
    %s173 = sphi 0, %s157
  $region4: #{simple_segmentation_forward.1} parent=0 // loop_header_branch
    %15 = sbr.rel (%p13) target = $region8
  $region5: #{simple_segmentation_forward.1} parent=0 // loop_body
    %s17 = ssub.s32 %s12, 1
    %s18 = ssub.s32 %s12, 2
    %s19 = sadd.s32 %s12, 1
    %s20 = ssub.s32 %s12, %s19
    %p21 = scmp.eq.s32.totalorder %s20, 0
    %s23 = sadd.s32 %s22, 1
    %s24 = scalar_select %p21, %s22, %s23
    %p27 = pneg %p21
    %p28 = scmp.eq.s32.totalorder %s12, 3
    %p29 = por %p27, %p28
    %p30 = scmp.ne.s32.totalorder %s22, %s25
    %p31 = scmp.eq.s32.totalorder %s12, 0
    %p32 = por %p30, %p31
    %p33 = scmp.ne.s32.totalorder %s22, %s25
    %p34 = scmp.eq.s32.totalorder %s17, 3
    %p35 = por %p33, %p34
    %p36 = scmp.ne.s32.totalorder %s25, %s26
    %p37 = scmp.eq.s32.totalorder %s17, 0
    %p38 = por %p36, %p37
    %p39 = scmp.ne.s32.totalorder %s25, %s26
    %p40 = scmp.eq.s32.totalorder %s18, 3
    %p41 = por %p39, %p40
    %p43 = scmp.ne.s32.totalorder %s26, %s42
    %p44 = scmp.eq.s32.totalorder %s18, 0
    %p45 = por %p43, %p44
    %s47 = sadd.s32 %s46, 1
    %p50 = scmp.eq.s32.totalorder %s12, 3
    %p51 = scmp.ne.s32.totalorder %s46, %s48
    %p52 = scmp.eq.s32.totalorder %s12, 0
    %p53 = por %p51, %p52
    %p54 = scmp.ne.s32.totalorder %s46, %s48
    %p55 = scmp.eq.s32.totalorder %s17, 3
    %p56 = por %p54, %p55
    %p57 = scmp.ne.s32.totalorder %s48, %s49
    %p58 = scmp.eq.s32.totalorder %s17, 0
    %p59 = por %p57, %p58
    %p60 = scmp.ne.s32.totalorder %s48, %s49
    %p61 = scmp.eq.s32.totalorder %s18, 3
    %p62 = por %p60, %p61
    %p64 = scmp.ne.s32.totalorder %s49, %s63
    %p65 = scmp.eq.s32.totalorder %s18, 0
    %p66 = por %p64, %p65
    %s68 = sadd.s32 %s67, 1
    %p71 = scmp.eq.s32.totalorder %s12, 3
    %p72 = scmp.ne.s32.totalorder %s67, %s69
    %p73 = scmp.eq.s32.totalorder %s12, 0
    %p74 = por %p72, %p73
    %p75 = scmp.ne.s32.totalorder %s67, %s69
    %p76 = scmp.eq.s32.totalorder %s17, 3
    %p77 = por %p75, %p76
    %p78 = scmp.ne.s32.totalorder %s69, %s70
    %p79 = scmp.eq.s32.totalorder %s17, 0
    %p80 = por %p78, %p79
    %p81 = scmp.ne.s32.totalorder %s69, %s70
    %p82 = scmp.eq.s32.totalorder %s18, 3
    %p83 = por %p81, %p82
    %p85 = scmp.ne.s32.totalorder %s70, %s84
    %p86 = scmp.eq.s32.totalorder %s18, 0
    %p87 = por %p85, %p86
    %s89 = sadd.s32 %s88, 1
    %p92 = scmp.eq.s32.totalorder %s12, 3
    %p93 = scmp.ne.s32.totalorder %s88, %s90
    %p94 = scmp.eq.s32.totalorder %s12, 0
    %p95 = por %p93, %p94
    %p96 = scmp.ne.s32.totalorder %s88, %s90
    %p97 = scmp.eq.s32.totalorder %s17, 3
    %p98 = por %p96, %p97
    %p99 = scmp.ne.s32.totalorder %s90, %s91
    %p100 = scmp.eq.s32.totalorder %s17, 0
    %p101 = por %p99, %p100
    %p102 = scmp.ne.s32.totalorder %s90, %s91
    %p103 = scmp.eq.s32.totalorder %s18, 3
    %p104 = por %p102, %p103
    %p106 = scmp.ne.s32.totalorder %s91, %s105
    %p107 = scmp.eq.s32.totalorder %s18, 0
    %p108 = por %p106, %p107
    %s110 = sadd.s32 %s109, 1
    %p113 = scmp.eq.s32.totalorder %s12, 3
    %p114 = scmp.ne.s32.totalorder %s109, %s111
    %p115 = scmp.eq.s32.totalorder %s12, 0
    %p116 = por %p114, %p115
    %p117 = scmp.ne.s32.totalorder %s109, %s111
    %p118 = scmp.eq.s32.totalorder %s17, 3
    %p119 = por %p117, %p118
    %p120 = scmp.ne.s32.totalorder %s111, %s112
    %p121 = scmp.eq.s32.totalorder %s17, 0
    %p122 = por %p120, %p121
    %p123 = scmp.ne.s32.totalorder %s111, %s112
    %p124 = scmp.eq.s32.totalorder %s18, 3
    %p125 = por %p123, %p124
    %p127 = scmp.ne.s32.totalorder %s112, %s126
    %p128 = scmp.eq.s32.totalorder %s18, 0
    %p129 = por %p127, %p128
    %s131 = sadd.s32 %s130, 1
    %p134 = scmp.eq.s32.totalorder %s12, 3
    %p135 = scmp.ne.s32.totalorder %s130, %s132
    %p136 = scmp.eq.s32.totalorder %s12, 0
    %p137 = por %p135, %p136
    %p138 = scmp.ne.s32.totalorder %s130, %s132
    %p139 = scmp.eq.s32.totalorder %s17, 3
    %p140 = por %p138, %p139
    %p141 = scmp.ne.s32.totalorder %s132, %s133
    %p142 = scmp.eq.s32.totalorder %s17, 0
    %p143 = por %p141, %p142
    %p144 = scmp.ne.s32.totalorder %s132, %s133
    %p145 = scmp.eq.s32.totalorder %s18, 3
    %p146 = por %p144, %p145
    %p148 = scmp.ne.s32.totalorder %s133, %s147
    %p149 = scmp.eq.s32.totalorder %s18, 0
    %p150 = por %p148, %p149
    %s151 = ssub.s32 %s12, %s19
    %p152 = scmp.eq.s32.totalorder %s151, 0
    %s154 = sadd.s32 %s153, 1
    %s155 = scalar_select %p152, %s153, %s154
    %p158 = pneg %p152
    %p159 = scmp.eq.s32.totalorder %s12, 3
    %p160 = por %p158, %p159
    %p161 = scmp.ne.s32.totalorder %s153, %s156
    %p162 = scmp.eq.s32.totalorder %s12, 0
    %p163 = por %p161, %p162
    %p164 = scmp.ne.s32.totalorder %s153, %s156
    %p165 = scmp.eq.s32.totalorder %s17, 3
    %p166 = por %p164, %p165
    %p167 = scmp.ne.s32.totalorder %s156, %s157
    %p168 = scmp.eq.s32.totalorder %s17, 0
    %p169 = por %p167, %p168
    %p170 = scmp.ne.s32.totalorder %s156, %s157
    %p171 = scmp.eq.s32.totalorder %s18, 3
    %p172 = por %p170, %p171
    %p174 = scmp.ne.s32.totalorder %s157, %s173
    %p175 = scmp.eq.s32.totalorder %s18, 0
    %p176 = por %p174, %p175
    %p177 = scmp.le.s32.totalorder 1, %s12
    %p178 = scmp.lt.s32.totalorder %s12, 5
    %p179 = pnand %p177, %p178
    %p180 = pneg %p179
    // Predicated region
    $region9: #{simple_segmentation_forward.1} parent=5 // pred_check
      _
    $region10: #{simple_segmentation_forward.1} parent=5 // pred_check_branch
      %182 = sbr.rel (%p179) target = $region12
    $region11: #{simple_segmentation_forward.1} parent=5 // pred_region
      %s183 = ssub.s32 %s12, 1
      // Predicated region
      $region13: #{simple_segmentation_forward.1} parent=11 // pred_check
        %p184 = pneg %p59
      $region14: #{simple_segmentation_forward.1} parent=11 // pred_check_branch
        %186 = sbr.rel (%p184) target = $region16
      $region15: #{simple_segmentation_forward.1} parent=11 // pred_region
        _
      $region16: #{simple_segmentation_forward.1} parent=11 // pred_fallthru
        _
      // Predicated region
      $region17: #{simple_segmentation_forward.1} parent=11 // pred_check
        %p187 = pneg %p80
      $region18: #{simple_segmentation_forward.1} parent=11 // pred_check_branch
        %189 = sbr.rel (%p187) target = $region20
      $region19: #{simple_segmentation_forward.1} parent=11 // pred_region
        _
      $region20: #{simple_segmentation_forward.1} parent=11 // pred_fallthru
        _
      // Predicated region
      $region21: #{simple_segmentation_forward.1} parent=11 // pred_check
        %p190 = pneg %p101
      $region22: #{simple_segmentation_forward.1} parent=11 // pred_check_branch
        %192 = sbr.rel (%p190) target = $region24
      $region23: #{simple_segmentation_forward.1} parent=11 // pred_region
        _
      $region24: #{simple_segmentation_forward.1} parent=11 // pred_fallthru
        _
      // Predicated region
      $region25: #{simple_segmentation_forward.1} parent=11 // pred_check
        %p193 = pneg %p122
      $region26: #{simple_segmentation_forward.1} parent=11 // pred_check_branch
        %195 = sbr.rel (%p193) target = $region28
      $region27: #{simple_segmentation_forward.1} parent=11 // pred_region
        _
      $region28: #{simple_segmentation_forward.1} parent=11 // pred_fallthru
        _
      // Predicated region
      $region29: #{simple_segmentation_forward.1} parent=11 // pred_check
        %p196 = pneg %p143
      $region30: #{simple_segmentation_forward.1} parent=11 // pred_check_branch
        %198 = sbr.rel (%p196) target = $region32
      $region31: #{simple_segmentation_forward.1} parent=11 // pred_region
        _
      $region32: #{simple_segmentation_forward.1} parent=11 // pred_fallthru
        _
    $region12: #{simple_segmentation_forward.1} parent=5 // pred_fallthru
      _
    %p199 = scmp.lt.s32.totalorder %s12, 4
    // Predicated region
    $region33: #{simple_segmentation_forward.1} parent=5 // pred_check
      %p200 = pneg %p199
    $region34: #{simple_segmentation_forward.1} parent=5 // pred_check_branch
      %202 = sbr.rel (%p200) target = $region36
    $region35: #{simple_segmentation_forward.1} parent=5 // pred_region
      // Predicated region
      $region37: #{simple_segmentation_forward.1} parent=35 // pred_check
        %p203 = pneg %p32
      $region38: #{simple_segmentation_forward.1} parent=35 // pred_check_branch
        %205 = sbr.rel (%p203) target = $region40
      $region39: #{simple_segmentation_forward.1} parent=35 // pred_region
        %p206 = scmp.lt.s32.totalorder %s12, 3
        %s207 = scalar_select %p206, %s12, 3
        %s208 = smul.addr %s207, 36
        %s209 = smul.addr %s208, 4
        %s210 = scalar_lea.vmem %s0, %s209
      $region40: #{simple_segmentation_forward.1} parent=35 // pred_fallthru
        _
    $region36: #{simple_segmentation_forward.1} parent=5 // pred_fallthru
      _
    %p211 = scmp.le.s32.totalorder 1, %s12
    %p212 = scmp.lt.s32.totalorder %s12, 5
    %p213 = pnand %p211, %p212
    %p214 = pneg %p213
    // Predicated region
    $region41: #{simple_segmentation_forward.1} parent=5 // pred_check
      _
    $region42: #{simple_segmentation_forward.1} parent=5 // pred_check_branch
      %216 = sbr.rel (%p213) target = $region44
    $region43: #{simple_segmentation_forward.1} parent=5 // pred_region
      %s217 = ssub.s32 %s12, 1
      %p218 = scmp.lt.s32.totalorder %s17, 3
      %s219 = scalar_select %p218, %s17, 3
      %s220 = smul.addr %s219, 36
      %s221 = smul.addr %s220, 4
      %s222 = scalar_lea.vmem %s0, %s221
      %p223 = pneg %p38
      %p224 = pneg %p35
      %p225 = pneg %p59
      %p226 = pneg %p56
      %p227 = pneg %p80
      %p228 = pneg %p77
      %p229 = pneg %p101
      %p230 = pneg %p98
      %p231 = pneg %p122
      %p232 = pneg %p119
      %p233 = pneg %p143
      %p234 = pneg %p140
      %p235 = pneg %p169
      %p236 = pneg %p166
      %p237 = scmp.lt.s32.totalorder %s17, 3
      %s238 = scalar_select %p237, %s17, 3
      %s239 = smul.addr %s238, 6
      %s240 = smul.addr %s239, 8
      %s241 = scalar_lea.vmem %s6, %s240
      %p242 = scmp.lt.s32.totalorder %s17, 3
      %s243 = scalar_select %p242, %s17, 3
      %s244 = smul.addr %s243, 36
      %s245 = smul.addr %s244, 4
      %s246 = scalar_lea.vmem %s0, %s245
      %p247 = scmp.lt.s32.totalorder %s17, 3
      %s248 = scalar_select %p247, %s17, 3
      %s249 = smul.addr %s248, 6
      %s250 = smul.addr %s249, 8
      %s251 = scalar_lea.vmem %s6, %s250
      %v253 = vld [vmem:[%s246] sm:$0xf]
      %v254 = vld [vmem:[%s246 + $0x4] sm:$0xf]
      %v255 = vld [vmem:[%s246 + $0x8] sm:$0xf]
      %v256 = vld [vmem:[%s246 + $0xc] sm:$0xf]
      %v257 = vld [vmem:[%s246 + $0x10] sm:$0xf]
      %v258 = vld [vmem:[%s246 + $0x14] sm:$0xf]
      %v259 = vld [vmem:[%s246 + $0x18] sm:$0xf]
      %v260 = vld [vmem:[%s246 + $0x1c] sm:$0xf]
      %v261 = vld [vmem:[%s246 + $0x20] sm:$0xf]
      %v262 = vld [vmem:[%s246 + $0x24] sm:$0xf]
      %v263 = vld [vmem:[%s246 + $0x28] sm:$0xf]
      %v264 = vld [vmem:[%s246 + $0x2c] sm:$0xf]
      %v265 = vld [vmem:[%s246 + $0x30] sm:$0xf]
      %v266 = vld [vmem:[%s246 + $0x34] sm:$0xf]
      %v267 = vld [vmem:[%s246 + $0x38] sm:$0xf]
      %v268 = vld [vmem:[%s246 + $0x3c] sm:$0xf]
      %v269 = vld [vmem:[%s246 + $0x40] sm:$0xf]
      %v270 = vld [vmem:[%s246 + $0x44] sm:$0xf]
      %v271 = vld [vmem:[%s246 + $0x48] sm:$0xf]
      %v272 = vld [vmem:[%s246 + $0x4c] sm:$0xf]
      %v273 = vld [vmem:[%s246 + $0x50] sm:$0xf]
      %v274 = vld [vmem:[%s246 + $0x54] sm:$0xf]
      %v275 = vld [vmem:[%s246 + $0x58] sm:$0xf]
      %v276 = vld [vmem:[%s246 + $0x5c] sm:$0xf]
      %v277 = vld [vmem:[%s246 + $0x60] sm:$0xf]
      %v278 = vld [vmem:[%s246 + $0x64] sm:$0xf]
      %v279 = vld [vmem:[%s246 + $0x68] sm:$0xf]
      %v280 = vld [vmem:[%s246 + $0x6c] sm:$0xf]
      %v281 = vld [vmem:[%s246 + $0x70] sm:$0xf]
      %v282 = vld [vmem:[%s246 + $0x74] sm:$0xf]
      %v283 = vld [vmem:[%s246 + $0x78] sm:$0xf]
      %v284 = vld [vmem:[%s246 + $0x7c] sm:$0xf]
      %v285 = vld [vmem:[%s246 + $0x80] sm:$0xf]
      %v286 = vld [vmem:[%s246 + $0x84] sm:$0xf]
      %v287 = vld [vmem:[%s246 + $0x88] sm:$0xf]
      %v288 = vld [vmem:[%s246 + $0x8c] sm:$0xf]
      %v289 = vld [vmem:[%s1] sm:$0xff]
      %v290 = vld [vmem:[%s1 + $0x8] sm:$0xf]
      %v291 = vld [vmem:[%s1 + $0xc] sm:$0xff]
      %v292 = vld [vmem:[%s1 + $0x14] sm:$0xf]
      %v293 = vld [vmem:[%s1 + $0x18] sm:$0xff]
      %v294 = vld [vmem:[%s1 + $0x20] sm:$0xf]
      %v295 = vld [vmem:[%s1 + $0x24] sm:$0xff]
      %v296 = vld [vmem:[%s1 + $0x2c] sm:$0xf]
      %v297 = vld [vmem:[%s1 + $0x30] sm:$0xff]
      %v298 = vld [vmem:[%s1 + $0x38] sm:$0xf]
      %v299 = vld [vmem:[%s1 + $0x3c] sm:$0xff]
      %v300 = vld [vmem:[%s1 + $0x44] sm:$0xf]
      %v301 = vld [vmem:[%s1 + $0x48] sm:$0xff]
      %v302 = vld [vmem:[%s1 + $0x50] sm:$0xf]
      %v303 = vld [vmem:[%s1 + $0x54] sm:$0xff]
      %v304 = vld [vmem:[%s1 + $0x5c] sm:$0xf]
      %v305 = vld [vmem:[%s2] sm:$0xff]
      %v306 = vld [vmem:[%s2 + $0x8] sm:$0xff]
      %v307 = vld [vmem:[%s2 + $0x10] sm:$0xff]
      %v308 = vld [vmem:[%s2 + $0x18] sm:$0xff]
      %v309 = vld [vmem:[%s2 + $0x20] sm:$0xff]
      %v310 = vld [vmem:[%s2 + $0x28] sm:$0xff]
      %v311 = vld [vmem:[%s2 + $0x30] sm:$0xff]
      %v312 = vld [vmem:[%s2 + $0x38] sm:$0xff]
      %314 = vset.pattern.permute.xlu0 0
      %315 = vperm.xlu0 %314, %v305
      %v316 = vpop.permute.xlu0 %315
      %319 = vset.pattern.permute.xlu0 0
      %320 = vperm.xlu0 %319, %v306
      %v321 = vpop.permute.xlu0 %320
      %324 = vset.pattern.permute.xlu0 0
      %325 = vperm.xlu0 %324, %v307
      %v326 = vpop.permute.xlu0 %325
      %329 = vset.pattern.permute.xlu0 0
      %330 = vperm.xlu0 %329, %v308
      %v331 = vpop.permute.xlu0 %330
      %334 = vset.pattern.permute.xlu0 0
      %335 = vperm.xlu0 %334, %v309
      %v336 = vpop.permute.xlu0 %335
      %339 = vset.pattern.permute.xlu0 0
      %340 = vperm.xlu0 %339, %v310
      %v341 = vpop.permute.xlu0 %340
      %344 = vset.pattern.permute.xlu0 0
      %345 = vperm.xlu0 %344, %v311
      %v346 = vpop.permute.xlu0 %345
      %349 = vset.pattern.permute.xlu0 0
      %350 = vperm.xlu0 %349, %v312
      %v351 = vpop.permute.xlu0 %350
      %v369 = vunpack.c.l.b16 %v289
      %v370 = vunpack.c.h.b16 %v289
      %v371 = vunpack.c.l.b16 %v290
      %v372 = vunpack.c.l.b16 %v291
      %v373 = vunpack.c.h.b16 %v291
      %v374 = vunpack.c.l.b16 %v292
      %v375 = vunpack.c.l.b16 %v293
      %v376 = vunpack.c.h.b16 %v293
      %v377 = vunpack.c.l.b16 %v294
      %v378 = vunpack.c.l.b16 %v295
      %v379 = vunpack.c.h.b16 %v295
      %v380 = vunpack.c.l.b16 %v296
      %v381 = vunpack.c.l.b16 %v297
      %v382 = vunpack.c.h.b16 %v297
      %v383 = vunpack.c.l.b16 %v298
      %v384 = vunpack.c.l.b16 %v299
      %v385 = vunpack.c.h.b16 %v299
      %v386 = vunpack.c.l.b16 %v300
      %v387 = vunpack.c.l.b16 %v301
      %v388 = vunpack.c.h.b16 %v301
      %v389 = vunpack.c.l.b16 %v302
      %v390 = vunpack.c.l.b16 %v303
      %v391 = vunpack.c.h.b16 %v303
      %v392 = vunpack.c.l.b16 %v304
      %v393 = vpack.c.b16 %v372, %v369
      %v394 = vpack.c.b16 %v373, %v370
      %v395 = vpack.c.b16 %v374, %v371
      %v396 = vpack.c.b16 %v378, %v375
      %v397 = vpack.c.b16 %v379, %v376
      %v398 = vpack.c.b16 %v380, %v377
      %v399 = vpack.c.b16 %v384, %v381
      %v400 = vpack.c.b16 %v385, %v382
      %v401 = vpack.c.b16 %v386, %v383
      %v402 = vpack.c.b16 %v390, %v387
      %v403 = vpack.c.b16 %v391, %v388
      %v404 = vpack.c.b16 %v392, %v389
      %v449 = vunpack.c.l.b16 %v253
      %v450 = vunpack.c.l.b16 %v254
      %v451 = vunpack.c.l.b16 %v255
      %v452 = vunpack.c.l.b16 %v256
      %v453 = vunpack.c.l.b16 %v257
      %v454 = vunpack.c.l.b16 %v258
      %v455 = vunpack.c.l.b16 %v259
      %v456 = vunpack.c.l.b16 %v260
      %v457 = vunpack.c.l.b16 %v261
      %v458 = vunpack.c.l.b16 %v262
      %v459 = vunpack.c.l.b16 %v263
      %v460 = vunpack.c.l.b16 %v264
      %v461 = vunpack.c.l.b16 %v265
      %v462 = vunpack.c.l.b16 %v266
      %v463 = vunpack.c.l.b16 %v267
      %v464 = vunpack.c.l.b16 %v268
      %v465 = vunpack.c.l.b16 %v269
      %v466 = vunpack.c.l.b16 %v270
      %v467 = vunpack.c.l.b16 %v271
      %v468 = vunpack.c.l.b16 %v272
      %v469 = vunpack.c.l.b16 %v273
      %v470 = vunpack.c.l.b16 %v274
      %v471 = vunpack.c.l.b16 %v275
      %v472 = vunpack.c.l.b16 %v276
      %v473 = vunpack.c.l.b16 %v277
      %v474 = vunpack.c.l.b16 %v278
      %v475 = vunpack.c.l.b16 %v279
      %v476 = vunpack.c.l.b16 %v280
      %v477 = vunpack.c.l.b16 %v281
      %v478 = vunpack.c.l.b16 %v282
      %v479 = vunpack.c.l.b16 %v283
      %v480 = vunpack.c.l.b16 %v284
      %v481 = vunpack.c.l.b16 %v285
      %v482 = vunpack.c.l.b16 %v286
      %v483 = vunpack.c.l.b16 %v287
      %v484 = vunpack.c.l.b16 %v288
      %v485 = vpack.c.b16 %v450, %v449
      %v486 = vpack.c.b16 %v452, %v451
      %v487 = vpack.c.b16 %v454, %v453
      %v488 = vpack.c.b16 %v456, %v455
      %v489 = vpack.c.b16 %v458, %v457
      %v490 = vpack.c.b16 %v460, %v459
      %v491 = vpack.c.b16 %v462, %v461
      %v492 = vpack.c.b16 %v464, %v463
      %v493 = vpack.c.b16 %v466, %v465
      %v494 = vpack.c.b16 %v468, %v467
      %v495 = vpack.c.b16 %v470, %v469
      %v496 = vpack.c.b16 %v472, %v471
      %v497 = vpack.c.b16 %v474, %v473
      %v498 = vpack.c.b16 %v476, %v475
      %v499 = vpack.c.b16 %v478, %v477
      %v500 = vpack.c.b16 %v480, %v479
      %v501 = vpack.c.b16 %v482, %v481
      %v502 = vpack.c.b16 %v484, %v483
      %vm521 = vcmask 261120
      %v523 = vsel %vm521, %v395, 0
      %v526 = vsel %vm521, %v398, 0
      %v529 = vsel %vm521, %v401, 0
      %v532 = vsel %vm521, %v404, 0
      %534 = vmatprep.subr.bf16.mxu0 0
      %535 = vmatpush1.bf16.msra.mxu0 %v485
      %536 = vmatprep.subr.bf16.mxu0 0
      %537 = vmatpush1.bf16.msra.mxu0 %v486
      %538 = vmatprep.subr.bf16.mxu0 0
      %539 = vmatpush1.bf16.msra.mxu0 %v487
      %540 = vmatprep.subr.bf16.mxu0 0
      %541 = vmatpush1.bf16.msra.mxu0 %v488
      %542 = vmatprep.subr.bf16.mxu0 0
      %543 = vmatpush1.bf16.msra.mxu0 %v489
      %544 = vmatprep.subr.bf16.mxu0 0
      %545 = vmatpush1.bf16.msra.mxu0 %v490
      %546 = vmatprep.subr.bf16.mxu0 0
      %547 = vmatpush1.bf16.msra.mxu0 %v491
      %548 = vmatprep.subr.bf16.mxu0 0
      %549 = vmatpush1.bf16.msra.mxu0 %v492
      %550 = vmatprep.subr.bf16.mxu0 0
      %551 = vmatpush1.bf16.msra.mxu0 %v493
      %552 = vmatprep.subr.bf16.mxu0 0
      %553 = vmatpush1.bf16.msra.mxu0 %v494
      %554 = vmatprep.subr.bf16.mxu0 0
      %555 = vmatpush1.bf16.msra.mxu0 %v495
      %556 = vmatprep.subr.bf16.mxu0 0
      %557 = vmatpush1.bf16.msra.mxu0 %v496
      %558 = vmatprep.subr.bf16.mxu0 0
      %559 = vmatpush1.bf16.msra.mxu0 %v497
      %560 = vmatprep.subr.bf16.mxu0 0
      %561 = vmatpush1.bf16.msra.mxu0 %v498
      %562 = vmatprep.subr.bf16.mxu0 0
      %563 = vmatpush1.bf16.msra.mxu0 %v499
      %564 = vmatprep.subr.bf16.mxu0 0
      %565 = vmatpush1.bf16.msra.mxu0 %v500
      %566 = vmatprep.mubr.bf16.mxu0 %v394
      %567 = vmatmul.mubr.bf16.gmra.mrb[0].mxu0 %v393
      %v568 = vpop.f32.mrb[0].mxu0
      %v569 = vadd.f32 %v316, %v568
      %v570 = vpop.f32.mrb[0].mxu0
      %v571 = vpop.f32.mrb[0].mxu0
      %v572 = vadd.f32 %v321, %v571
      %v573 = vpop.f32.mrb[0].mxu0
      %574 = vmatprep.mubr.bf16.mxu0 %v397
      %575 = vmatmul.mubr.bf16.gmra.mrb[0].mxu0 %v396
      %v576 = vpop.f32.mrb[0].mxu0
      %v577 = vadd.f32 %v326, %v576
      %v578 = vpop.f32.mrb[0].mxu0
      %v579 = vpop.f32.mrb[0].mxu0
      %v580 = vadd.f32 %v331, %v579
      %v581 = vpop.f32.mrb[0].mxu0
      %582 = vmatprep.mubr.bf16.mxu0 %v400
      %583 = vmatmul.mubr.bf16.gmra.mrb[0].mxu0 %v399
      %v584 = vpop.f32.mrb[0].mxu0
      %v585 = vadd.f32 %v336, %v584
      %v586 = vpop.f32.mrb[0].mxu0
      %v587 = vpop.f32.mrb[0].mxu0
      %v588 = vadd.f32 %v341, %v587
      %v589 = vpop.f32.mrb[0].mxu0
      %590 = vmatprep.mubr.bf16.mxu0 %v403
      %591 = vmatmul.mubr.bf16.gmra.mrb[0].mxu0 %v402
      %v592 = vpop.f32.mrb[0].mxu0
      %v593 = vadd.f32 %v346, %v592
      %v594 = vpop.f32.mrb[0].mxu0
      %v595 = vpop.f32.mrb[0].mxu0
      %v596 = vadd.f32 %v351, %v595
      %v597 = vpop.f32.mrb[0].mxu0
      %598 = vdwg.mxu0
      %599 = vmatprep.subr.bf16.mxu0 0
      %600 = vmatpush1.bf16.msra.mxu0 %v501
      %601 = vmatprep.subr.bf16.mxu0 0
      %602 = vmatpush1.bf16.msra.mxu0 %v502
      %603 = vmatprep.subr.bf16.mxu0 0
      %604 = vmatpush1.bf16.msra.mxu0 0
      %605 = vmatprep.subr.bf16.mxu0 0
      %606 = vmatpush1.bf16.msra.mxu0 0
      %607 = vmatprep.subr.bf16.mxu0 0
      %608 = vmatpush1.bf16.msra.mxu0 0
      %609 = vmatprep.subr.bf16.mxu0 0
      %610 = vmatpush1.bf16.msra.mxu0 0
      %611 = vmatprep.subr.bf16.mxu0 0
      %612 = vmatpush1.bf16.msra.mxu0 0
      %613 = vmatprep.subr.bf16.mxu0 0
      %614 = vmatpush1.bf16.msra.mxu0 0
      %615 = vmatprep.subr.bf16.mxu0 0
      %616 = vmatpush1.bf16.msra.mxu0 0
      %617 = vmatprep.subr.bf16.mxu0 0
      %618 = vmatpush1.bf16.msra.mxu0 0
      %619 = vmatprep.subr.bf16.mxu0 0
      %620 = vmatpush1.bf16.msra.mxu0 0
      %621 = vmatprep.subr.bf16.mxu0 0
      %622 = vmatpush1.bf16.msra.mxu0 0
      %623 = vmatprep.subr.bf16.mxu0 0
      %624 = vmatpush1.bf16.msra.mxu0 0
      %625 = vmatprep.subr.bf16.mxu0 0
      %626 = vmatpush1.bf16.msra.mxu0 0
      %627 = vmatprep.subr.bf16.mxu0 0
      %628 = vmatpush1.bf16.msra.mxu0 0
      %629 = vmatprep.subr.bf16.mxu0 0
      %630 = vmatpush1.bf16.msra.mxu0 0
      %631 = vmatprep.mubr.bf16.mxu0 0
      %632 = vmatmul.mubr.bf16.gmra.mrb[0].mxu0 %v523
      %v633 = vpop.f32.mrb[0].mxu0
      %v634 = vadd.f32 %v569, %v633
      %v635 = vpop.f32.mrb[0].mxu0
      %v636 = vpop.f32.mrb[0].mxu0
      %v637 = vadd.f32 %v572, %v636
      %v638 = vpop.f32.mrb[0].mxu0
      %639 = vmatprep.mubr.bf16.mxu0 0
      %640 = vmatmul.mubr.bf16.gmra.mrb[0].mxu0 %v526
      %v641 = vpop.f32.mrb[0].mxu0
      %v642 = vadd.f32 %v577, %v641
      %v643 = vpop.f32.mrb[0].mxu0
      %v644 = vpop.f32.mrb[0].mxu0
      %v645 = vadd.f32 %v580, %v644
      %v646 = vpop.f32.mrb[0].mxu0
      %647 = vmatprep.mubr.bf16.mxu0 0
      %648 = vmatmul.mubr.bf16.gmra.mrb[0].mxu0 %v529
      %v649 = vpop.f32.mrb[0].mxu0
      %v650 = vadd.f32 %v585, %v649
      %v651 = vpop.f32.mrb[0].mxu0
      %v652 = vpop.f32.mrb[0].mxu0
      %v653 = vadd.f32 %v588, %v652
      %v654 = vpop.f32.mrb[0].mxu0
      %655 = vmatprep.mubr.bf16.mxu0 0
      %656 = vmatmul.mubr.bf16.gmra.mrb[0].mxu0 %v532
      %v657 = vpop.f32.mrb[0].mxu0
      %v658 = vadd.f32 %v593, %v657
      %v659 = vpop.f32.mrb[0].mxu0
      %v660 = vpop.f32.mrb[0].mxu0
      %v661 = vadd.f32 %v596, %v660
      %v662 = vpop.f32.mrb[0].mxu0
      %663 = vdwg.mxu0
      %v664 = vmax.f32 %v634, 0.0
      %v665 = vmax.f32 %v637, 0.0
      %v666 = vmax.f32 %v642, 0.0
      %v667 = vmax.f32 %v645, 0.0
      %v668 = vmax.f32 %v650, 0.0
      %v669 = vmax.f32 %v653, 0.0
      %v670 = vmax.f32 %v658, 0.0
      %v671 = vmax.f32 %v661, 0.0
      %v672 = vld [vmem:[%s3] sm:$0xf]
      %v673 = vld [vmem:[%s3 + $0x4] sm:$0xf]
      %v674 = vld [vmem:[%s3 + $0x8] sm:$0xf]
      %v675 = vpack.c.bf16 %v665, %v664
      %v676 = vpack.c.bf16 %v667, %v666
      %v677 = vpack.c.bf16 %v669, %v668
      %v678 = vpack.c.bf16 %v671, %v670
      %v679 = vld [vmem:[%s4] sm:$0xff]
      %v680 = vld [vmem:[%s4 + $0x8] sm:$0xff]
      %v681 = vld [vmem:[%s4 + $0x10] sm:$0xff]
      %683 = vset.pattern.permute.xlu0 0
      %684 = vperm.xlu0 %683, %v679
      %v685 = vpop.permute.xlu0 %684
      %688 = vset.pattern.permute.xlu0 0
      %689 = vperm.xlu0 %688, %v680
      %v690 = vpop.permute.xlu0 %689
      %693 = vset.pattern.permute.xlu0 0
      %694 = vperm.xlu0 %693, %v681
      %v695 = vpop.permute.xlu0 %694
      %v700 = vunpack.c.l.b16 %v672
      %v701 = vunpack.c.l.b16 %v673
      %v702 = vunpack.c.l.b16 %v674
      %v703 = vpack.c.b16 %v701, %v700
      %v704 = vpack.c.b16 %v702, %v702
      %vm705 = vcmask 523264
      %v707 = vsel %vm705, %v703, 0
      %v710 = vsel %vm705, %v704, 0
      %712 = vmatprep.subr.bf16.mxu0 0
      %713 = vmatpush1.bf16.msra.mxu0 %v675
      %714 = vmatprep.subr.bf16.mxu0 0
      %715 = vmatpush1.bf16.msra.mxu0 %v676
      %716 = vmatprep.subr.bf16.mxu0 0
      %717 = vmatpush1.bf16.msra.mxu0 %v677
      %718 = vmatprep.subr.bf16.mxu0 0
      %719 = vmatpush1.bf16.msra.mxu0 %v678
      %720 = vmatprep.subr.bf16.mxu0 0
      %721 = vmatpush1.bf16.msra.mxu0 0
      %722 = vmatprep.subr.bf16.mxu0 0
      %723 = vmatpush1.bf16.msra.mxu0 0
      %724 = vmatprep.subr.bf16.mxu0 0
      %725 = vmatpush1.bf16.msra.mxu0 0
      %726 = vmatprep.subr.bf16.mxu0 0
      %727 = vmatpush1.bf16.msra.mxu0 0
      %728 = vmatprep.subr.bf16.mxu0 0
      %729 = vmatpush1.bf16.msra.mxu0 0
      %730 = vmatprep.subr.bf16.mxu0 0
      %731 = vmatpush1.bf16.msra.mxu0 0
      %732 = vmatprep.subr.bf16.mxu0 0
      %733 = vmatpush1.bf16.msra.mxu0 0
      %734 = vmatprep.subr.bf16.mxu0 0
      %735 = vmatpush1.bf16.msra.mxu0 0
      %736 = vmatprep.subr.bf16.mxu0 0
      %737 = vmatpush1.bf16.msra.mxu0 0
      %738 = vmatprep.subr.bf16.mxu0 0
      %739 = vmatpush1.bf16.msra.mxu0 0
      %740 = vmatprep.subr.bf16.mxu0 0
      %741 = vmatpush1.bf16.msra.mxu0 0
      %742 = vmatprep.subr.bf16.mxu0 0
      %743 = vmatpush1.bf16.msra.mxu0 0
      %744 = vmatprep.mubr.bf16.mxu0 0
      %745 = vmatmul.mubr.bf16.gmra.mrb[0].mxu0 %v707
      %v746 = vpop.f32.mrb[0].mxu0
      %v747 = vadd.f32 %v685, %v746
      %v748 = vpop.f32.mrb[0].mxu0
      %v749 = vpop.f32.mrb[0].mxu0
      %v750 = vadd.f32 %v690, %v749
      %v751 = vpop.f32.mrb[0].mxu0
      %752 = vmatprep.mubr.bf16.mxu0 0
      %753 = vmatmul.mubr.bf16.gmra.mrb[0].mxu0 %v710
      %v754 = vpop.f32.mrb[0].mxu0
      %v755 = vadd.f32 %v695, %v754
      %v756 = vpop.f32.mrb[0].mxu0
      %v757 = vpop.f32.mrb[0].mxu0
      %v758 = vpop.f32.mrb[0].mxu0
      %759 = vdwg.mxu0
      %v760 = vld [vmem:[%s5] sm:$0xff]
      %v761 = vld [vmem:[%s5 + $0x8] sm:$0xff]
      %v762 = vld [vmem:[%s5 + $0x10] sm:$0xff]
      %v763 = vld [vmem:[%s5 + $0x18] sm:$0xff]
      %v764 = vld [vmem:[%s5 + $0x20] sm:$0xff]
      %v765 = vld [vmem:[%s5 + $0x28] sm:$0xff]
      %v766 = vld [vmem:[%s5 + $0x30] sm:$0xff]
      %v767 = vld [vmem:[%s5 + $0x38] sm:$0xff]
      %v768 = vld [vmem:[%s5 + $0x40] sm:$0xff]
      %v769 = vld [vmem:[%s5 + $0x48] sm:$0xff]
      %v770 = vld [vmem:[%s5 + $0x50] sm:$0xff]
      %v771 = vld [vmem:[%s5 + $0x58] sm:$0xff]
      %v772 = vld [vmem:[%s5 + $0x60] sm:$0xff]
      %v773 = vld [vmem:[%s5 + $0x68] sm:$0xff]
      %v774 = vld [vmem:[%s5 + $0x70] sm:$0xff]
      %v775 = vld [vmem:[%s5 + $0x78] sm:$0xff]
      %v777 = vsel %vm705, %v747, 0
      %v780 = vsel %vm705, %v750, 0
      %v783 = vsel %vm705, %v755, 0
      %785 = vmatprep.subr.mxu0 %v761
      %786 = vmatpush1.msra.mxu0 %v760
      %787 = vmatprep.subr.mxu0 %v763
      %788 = vmatpush1.msra.mxu0 %v762
      %789 = vmatprep.subr.mxu0 %v765
      %790 = vmatpush1.msra.mxu0 %v764
      %791 = vmatprep.subr.mxu0 %v767
      %792 = vmatpush1.msra.mxu0 %v766
      %793 = vmatprep.subr.mxu0 %v769
      %794 = vmatpush1.msra.mxu0 %v768
      %795 = vmatprep.subr.mxu0 %v771
      %796 = vmatpush1.msra.mxu0 %v770
      %797 = vmatprep.subr.mxu0 %v773
      %798 = vmatpush1.msra.mxu0 %v772
      %799 = vmatprep.subr.mxu0 %v775
      %800 = vmatpush1.msra.mxu0 %v774
      %801 = vmatprep.subr.mxu0 0.0
      %802 = vmatpush1.msra.mxu0 0.0
      %803 = vmatprep.subr.mxu0 0.0
      %804 = vmatpush1.msra.mxu0 0.0
      %805 = vmatprep.subr.mxu0 0.0
      %806 = vmatpush1.msra.mxu0 0.0
      %807 = vmatprep.subr.mxu0 0.0
      %808 = vmatpush1.msra.mxu0 0.0
      %809 = vmatprep.subr.mxu0 0.0
      %810 = vmatpush1.msra.mxu0 0.0
      %811 = vmatprep.subr.mxu0 0.0
      %812 = vmatpush1.msra.mxu0 0.0
      %813 = vmatprep.subr.mxu0 0.0
      %814 = vmatpush1.msra.mxu0 0.0
      %815 = vmatprep.subr.mxu0 0.0
      %816 = vmatpush1.msra.mxu0 0.0
      %817 = vmatprep.subr.mxu0 0.0
      %818 = vmatpush1.msra.mxu0 0.0
      %819 = vmatprep.subr.mxu0 0.0
      %820 = vmatpush1.msra.mxu0 0.0
      %821 = vmatprep.subr.mxu0 0.0
      %822 = vmatpush1.msra.mxu0 0.0
      %823 = vmatprep.subr.mxu0 0.0
      %824 = vmatpush1.msra.mxu0 0.0
      %825 = vmatprep.subr.mxu0 0.0
      %826 = vmatpush1.msra.mxu0 0.0
      %827 = vmatprep.subr.mxu0 0.0
      %828 = vmatpush1.msra.mxu0 0.0
      %829 = vmatprep.subr.mxu0 0.0
      %830 = vmatpush1.msra.mxu0 0.0
      %831 = vmatprep.subr.mxu0 0.0
      %832 = vmatpush1.msra.mxu0 0.0
      %833 = vmatprep.subr.mxu0 0.0
      %834 = vmatpush1.msra.mxu0 0.0
      %835 = vmatprep.subr.mxu0 0.0
      %836 = vmatpush1.msra.mxu0 0.0
      %837 = vmatprep.subr.mxu0 0.0
      %838 = vmatpush1.msra.mxu0 0.0
      %839 = vmatprep.subr.mxu0 0.0
      %840 = vmatpush1.msra.mxu0 0.0
      %841 = vmatprep.subr.mxu0 0.0
      %842 = vmatpush1.msra.mxu0 0.0
      %843 = vmatprep.subr.mxu0 0.0
      %844 = vmatpush1.msra.mxu0 0.0
      %845 = vmatprep.subr.mxu0 0.0
      %846 = vmatpush1.msra.mxu0 0.0
      %847 = vmatprep.subr.mxu0 0.0
      %848 = vmatpush1.msra.mxu0 0.0
      %849 = vmatprep.mubr.f32.mxu0 0.0
      %850 = vmatmul.mubr.f32.gmra.mrb[0].mxu0 %v777
      %v851 = vpop.f32.mrb[0].mxu0
      %v852 = vadd.f32 0.0, %v851
      %v853 = vpop.f32.mrb[0].mxu0
      %v854 = vadd.f32 0.0, %v853
      %855 = vmatprep.mubr.f32.mxu0 0.0
      %856 = vmatmul.mubr.f32.gmra.mrb[0].mxu0 %v780
      %v857 = vpop.f32.mrb[0].mxu0
      %v858 = vadd.f32 0.0, %v857
      %v859 = vpop.f32.mrb[0].mxu0
      %v860 = vadd.f32 0.0, %v859
      %861 = vmatprep.mubr.f32.mxu0 0.0
      %862 = vmatmul.mubr.f32.gmra.mrb[0].mxu0 %v783
      %v863 = vpop.f32.mrb[0].mxu0
      %v864 = vadd.f32 0.0, %v863
      %v865 = vpop.f32.mrb[0].mxu0
      %v866 = vadd.f32 0.0, %v865
      %867 = vdwg.mxu0
      %868 = vst [vmem:[%s251] sm:$0xff] %v852
      %869 = vst [vmem:[%s251 + $0x8] sm:$0xff] %v854
      %870 = vst [vmem:[%s251 + $0x10] sm:$0xff] %v858
      %871 = vst [vmem:[%s251 + $0x18] sm:$0xff] %v860
      %872 = vst [vmem:[%s251 + $0x20] sm:$0xff] %v864
      %873 = vst [vmem:[%s251 + $0x28] sm:$0xff] %v866
      %p874 = scmp.lt.s32.totalorder %s17, 3
      %s875 = scalar_select %p874, %s17, 3
      %s876 = smul.addr %s875, 6
      %s877 = smul.addr %s876, 8
      %s878 = scalar_lea.vmem %s6, %s877
      // Predicated region
      $region45: #{simple_segmentation_forward.1} parent=43 // pred_check
        %p879 = pneg %p166
      $region46: #{simple_segmentation_forward.1} parent=43 // pred_check_branch
        %881 = sbr.rel (%p879) target = $region48
      $region47: #{simple_segmentation_forward.1} parent=43 // pred_region
        _
      $region48: #{simple_segmentation_forward.1} parent=43 // pred_fallthru
        _
    $region44: #{simple_segmentation_forward.1} parent=5 // pred_fallthru
      _
    %p882 = scmp.le.s32.totalorder 2, %s12
    // Predicated region
    $region49: #{simple_segmentation_forward.1} parent=5 // pred_check
      %p883 = pneg %p882
    $region50: #{simple_segmentation_forward.1} parent=5 // pred_check_branch
      %885 = sbr.rel (%p883) target = $region52
    $region51: #{simple_segmentation_forward.1} parent=5 // pred_region
      %s886 = ssub.s32 %s12, 2
      // Predicated region
      $region53: #{simple_segmentation_forward.1} parent=51 // pred_check
        %p887 = pneg %p172
      $region54: #{simple_segmentation_forward.1} parent=51 // pred_check_branch
        %889 = sbr.rel (%p887) target = $region56
      $region55: #{simple_segmentation_forward.1} parent=51 // pred_region
        %p890 = scmp.lt.s32.totalorder %s18, 3
        %s891 = scalar_select %p890, %s18, 3
        %s892 = smul.addr %s891, 6
        %s893 = smul.addr %s892, 8
        %s894 = scalar_lea.vmem %s6, %s893
      $region56: #{simple_segmentation_forward.1} parent=51 // pred_fallthru
        _
    $region52: #{simple_segmentation_forward.1} parent=5 // pred_fallthru
      _
  $region6: #{simple_segmentation_forward.1} parent=0 // loop_footer
    %s16 = sadd.s32 1, %s12
  $region7: #{simple_segmentation_forward.1} parent=0 // loop_footer_branch
    %11 = sbr.rel target = $region3
  $region8: #{simple_segmentation_forward.1} parent=0 // loop_exit
    _

</llo_original>
